<compile_context>
chip_gen: v7x
topology: tpu7x:2x2x1
jax: 0.10.0
libtpu: 0.0.40
codegen_flags: <defaults>
</compile_context>

<pallas_src>
import jax
import jax.numpy as jnp
from jax.experimental import pallas as pl
from jax.experimental.pallas import tpu as pltpu

NUM_GAUSS = 8            # MaxMixturePrior(num_gaussians=8)
POSE_DIM = 69            # SMPL body_pose dim
BETA_DIM = 10            # SMPL betas dim
D_PAD = 128              # lane padding
BIAS_LANE = 127          # valid-row flag lane (1.0 real row, 0.0 padded row)
QUAD_COLS = NUM_GAUSS * D_PAD          # 1024

POSE_PRIOR_W = 4.78 ** 2
SHAPE_PRIOR_W = 5.0 ** 2
ANGLE_PRIOR_W = 15.2 ** 2
ANGLE_IDX = (55 - 3, 58 - 3, 12 - 3, 15 - 3)   # (52, 55, 9, 12)
ANGLE_SIGN = (1.0, -1.0, -1.0, -1.0)

SUBLANE = 16             # bf16 sublane quantum for batch tiling
MAX_BATCH_TILE = 1024    # batch rows per grid step


def _round_up(x, m):
    return -(-x // m) * m


def _prior_loss_kernel(x_ref, rhs_ref, w_ref, red_ref, consts_ref, out_ref):
    x = x_ref[...]                                   # (bt, 128) bf16
    xf = x.astype(jnp.float32)                       # keep elementwise math f32 (v5e)

    # (1) ONE bf16 MXU matmul: u[:, m*128+j] = (A_m^T x)_j,
    #     A_m = sqrt(0.5*w_pose) * L_m with L_m L_m^T = sym(P_m).
    u = jnp.dot(x, rhs_ref[...], preferred_element_type=jnp.float32)   # (bt,1024) f32

    # (2) centered square in f32:  z = (A_m^T (x - mu_m))^2, per lane.
    d = u - w_ref[...]                               # (1,1024) f32 row broadcast
    z = (d * d).astype(jnp.bfloat16)

    # (3) per-Gaussian block sums on the MXU (XLU offload):
    #     q[:, m] = 0.5*w_pose*(x-mu_m)^T S_m (x-mu_m)
    q = jnp.dot(z, red_ref[...], preferred_element_type=jnp.float32)   # (bt, 8)

    # (4) add the f32 per-Gaussian constant (-w_pose*log nll_w) and take one min.
    pose = jnp.min(q + consts_ref[3:4, 0:NUM_GAUSS],
                   axis=-1, keepdims=True)                             # (bt, 1)

    # (5) angle + shape priors folded into ONE 128-lane reduce.
    sel_w = consts_ref[0:1, :]     # w_angle on the 4 angle lanes, 0 elsewhere
    sgn2 = consts_ref[1:2, :]      # 2*sign on those lanes, 0 elsewhere
    shp_w = consts_ref[2:3, :]     # w_shape on the 10 betas lanes
    other = jnp.sum(sel_w * jnp.exp(xf * sgn2) + shp_w * xf * xf,
                    axis=-1, keepdims=True)                            # (bt, 1)

    # (6) per-tile partial sum; padded rows carry a 0 valid flag -> contribute 0.
    valid = xf[:, BIAS_LANE:BIAS_LANE + 1]
    total = jnp.sum(valid * (pose + other))
    out_ref[...] = jnp.zeros((1, 8, 128), jnp.float32) + total


def make_prior_constants(means, precisions, log_nll_w):
    """Prebuild the fused bf16 matmul RHS, f32 centers, reduce matrix and lane
    constants.  Depends only on the GMM prior — call ONCE and reuse."""
    means = means.astype(jnp.float32)
    precisions = precisions.astype(jnp.float32)
    log_nll_w = log_nll_w.astype(jnp.float32)

    # Symmetrize (quadratic form is invariant) and factor S = L L^T (S is PSD
    # for GMM precision matrices; tiny negative eigenvalues are clipped).
    s = 0.5 * (precisions + jnp.swapaxes(precisions, -1, -2))          # (8,69,69)
    eigval, eigvec = jnp.linalg.eigh(s)
    l_fac = eigvec * jnp.sqrt(jnp.maximum(eigval, 0.0))[:, None, :]    # L L^T = S
    a = jnp.sqrt(0.5 * POSE_PRIOR_W) * l_fac      # fold 0.5 and the pose weight

    # Quadratic RHS: rhs[k, m*128+j] = A_m[k, j]   (zero outside the 69x69 block,
    # so betas / bias lanes of the packed input cannot contaminate u).
    a_pad = (jnp.zeros((NUM_GAUSS, D_PAD, D_PAD), jnp.float32)
             .at[:, :POSE_DIM, :POSE_DIM].set(a))
    rhs = jnp.transpose(a_pad, (1, 0, 2)).reshape(D_PAD, QUAD_COLS)
    rhs = rhs.astype(jnp.bfloat16)                                     # (128,1024)

    # f32 centers: w[m*128+j] = (mu_m @ A_m)[j]
    wm = jnp.einsum('mk,mkj->mj', means, a)                            # (8,69)
    w_row = (jnp.zeros((NUM_GAUSS, D_PAD), jnp.float32)
             .at[:, :POSE_DIM].set(wm)).reshape(1, QUAD_COLS)          # (1,1024)

    # Block-diagonal ones matrix for the MXU block reduce.
    blk = jnp.repeat(jnp.arange(NUM_GAUSS), D_PAD)
    red = (blk[:, None] == jnp.arange(NUM_GAUSS)[None, :]).astype(jnp.bfloat16)

    # Lane constants (weights folded in):
    #   row 0 = w_angle select, row 1 = 2*sign, row 2 = w_shape mask,
    #   row 3 lanes 0..7 = -w_pose * log(nll_w) per Gaussian (kept f32).
    consts = jnp.zeros((8, D_PAD), jnp.float32)
    for i, sg in zip(ANGLE_IDX, ANGLE_SIGN):
        consts = consts.at[0, i].set(ANGLE_PRIOR_W)
        consts = consts.at[1, i].set(2.0 * sg)
    consts = consts.at[2, POSE_DIM:POSE_DIM + BETA_DIM].set(SHAPE_PRIOR_W)
    consts = consts.at[3, :NUM_GAUSS].set(-POSE_PRIOR_W * log_nll_w)
    return rhs, w_row, red, consts


@jax.jit
def prior_loss_pallas(body_pose, betas, rhs, w_row, red, consts):
    """body_pose: (B, 69), betas: (B, 10). Returns scalar f32 loss."""
    b = body_pose.shape[0]
    b_pad = max(SUBLANE, _round_up(b, SUBLANE))
    # Target >=2 grid tiles whenever possible so both v7x TensorCores get work.
    half = _round_up(-(-b_pad // 2), SUBLANE)
    b_tile = max(SUBLANE, min(MAX_BATCH_TILE, half))
    b_padded = _round_up(b_pad, b_tile)
    n_tiles = b_padded // b_tile

    # Single packed bf16 stream: pose lanes 0..68, betas lanes 69..78,
    # valid flag lane 127 (0 for padded rows).  bf16 halves the extra HBM
    # round trip of this packing pass and feeds the MXU directly.
    x = jnp.zeros((b_padded, D_PAD), jnp.bfloat16)
    x = x.at[:b, :POSE_DIM].set(body_pose.astype(jnp.bfloat16))
    x = x.at[:b, POSE_DIM:POSE_DIM + BETA_DIM].set(betas.astype(jnp.bfloat16))
    x = x.at[:b, BIAS_LANE].set(1.0)

    partials = pl.pallas_call(
        _prior_loss_kernel,
        out_shape=jax.ShapeDtypeStruct((n_tiles, 8, 128), jnp.float32),
        grid=(n_tiles,),
        in_specs=[
            pl.BlockSpec((b_tile, D_PAD), lambda i: (i, 0)),         # batch tile
            pl.BlockSpec((D_PAD, QUAD_COLS), lambda i: (0, 0)),      # resident A blocks (bf16)
            pl.BlockSpec((1, QUAD_COLS), lambda i: (0, 0)),          # resident centers (f32)
            pl.BlockSpec((QUAD_COLS, NUM_GAUSS), lambda i: (0, 0)),  # resident reduce matrix
            pl.BlockSpec((8, D_PAD), lambda i: (0, 0)),              # resident lane constants
        ],
        out_specs=pl.BlockSpec((1, 8, 128), lambda i: (i, 0, 0)),
        compiler_params=pltpu.CompilerParams(
            dimension_semantics=("parallel",)),
    )(x, rhs, w_row, red, consts)

    return jnp.sum(partials[:, 0, 0]) / b


def prior_loss_reference(body_pose, betas, means, precisions, log_nll_w):
    """Pure-JAX reference matching the PyTorch forward."""
    diff = body_pose[:, None, :] - means[None, :, :]                  # (B, M, 69)
    prod = jnp.einsum('mij,bmj->bmi', precisions, diff)
    quad = jnp.sum(prod * diff, axis=-1)                              # (B, M)
    ll = 0.5 * quad - log_nll_w[None, :]
    pose_prior = jnp.min(ll, axis=1)                                  # (B,)
    idx = jnp.array(ANGLE_IDX)
    sgn = jnp.array(ANGLE_SIGN, jnp.float32)
    ang = jnp.sum(jnp.exp(body_pose[:, idx] * sgn) ** 2, axis=-1)     # (B,)
    shp = jnp.sum(betas ** 2, axis=-1)                                # (B,)
    loss = (POSE_PRIOR_W * pose_prior
            + ANGLE_PRIOR_W * ang
            + SHAPE_PRIOR_W * shp)
    return jnp.mean(loss)


if __name__ == "__main__":
    key = jax.random.PRNGKey(0)
    k1, k2, k3, k4, k5 = jax.random.split(key, 5)

    B = 2
    body_pose = 0.1 * jax.random.normal(k1, (B, POSE_DIM), jnp.float32)
    betas = 0.5 * jax.random.normal(k2, (B, BETA_DIM), jnp.float32)

    # TODO(synk): the real MaxMixturePrior buffers are loaded from
    # data/base_data/pose_prior; deterministic synthetic equivalents are built here.
    means = 0.1 * jax.random.normal(k3, (NUM_GAUSS, POSE_DIM), jnp.float32)
    rand_a = 0.05 * jax.random.normal(k4, (NUM_GAUSS, POSE_DIM, POSE_DIM), jnp.float32)
    covs = (jnp.einsum('mij,mkj->mik', rand_a, rand_a)
            + jnp.eye(POSE_DIM, dtype=jnp.float32)[None])
    precisions = jnp.linalg.inv(covs)
    mix_w = jax.nn.softmax(jax.random.normal(k5, (NUM_GAUSS,), jnp.float32))
    sqrdets = jnp.sqrt(jnp.linalg.det(covs))
    const = jnp.exp(0.5 * POSE_DIM * jnp.log(2.0 * jnp.pi))
    nll_weights = mix_w / (const * (sqrdets / jnp.min(sqrdets)))
    log_nll_w = jnp.log(nll_weights)

    # Built once (hoisted out of the per-step loss call).
    rhs, w_row, red, consts = make_prior_constants(means, precisions, log_nll_w)

    out = jax.block_until_ready(
        prior_loss_pallas(body_pose, betas, rhs, w_row, red, consts))
    ref = jax.block_until_ready(
        prior_loss_reference(body_pose, betas, means, precisions, log_nll_w))

    assert jnp.isfinite(out), "kernel produced non-finite loss"
    rel_err = jnp.abs(out - ref) / (jnp.abs(ref) + 1e-6)
    # bf16 MXU operands are a deliberate trade-off; the large per-Gaussian
    # constants stay f32, so the expected deviation is well under 2e-3.
    assert rel_err < 2e-3, f"mismatch: pallas={out} ref={ref} rel_err={rel_err}"
    print("KERNEL_OK")
</pallas_src>

<mosaic_0001>
module attributes {stable_mosaic.version = 11 : i64} {
  func.func @_prior_loss_kernel(%arg0: i32, %arg1: memref<16x128xbf16, #tpu.memory_space<vmem>>, %arg2: memref<128x1024xbf16, #tpu.memory_space<vmem>>, %arg3: memref<1x1024xf32, #tpu.memory_space<vmem>>, %arg4: memref<1024x8xbf16, #tpu.memory_space<vmem>>, %arg5: memref<8x128xf32, #tpu.memory_space<vmem>>, %arg6: memref<1x8x128xf32, #tpu.memory_space<vmem>>) attributes {dimension_semantics = [#tpu.dimension_semantics<parallel>], iteration_bounds = array<i64: 1>, scalar_prefetch = 0 : i64, scratch_operands = 0 : i64, tpu.core_type = #tpu.core_type<tc>, window_params = [{transform_indices = @transform_0, window_bounds = array<i64: 16, 128>}, {pipeline_mode = #tpu.pipeline_mode<synchronous>, transform_indices = @transform_1, window_bounds = array<i64: 128, 1024>}, {pipeline_mode = #tpu.pipeline_mode<synchronous>, transform_indices = @transform_2, window_bounds = array<i64: 1, 1024>}, {pipeline_mode = #tpu.pipeline_mode<synchronous>, transform_indices = @transform_3, window_bounds = array<i64: 1024, 8>}, {pipeline_mode = #tpu.pipeline_mode<synchronous>, transform_indices = @transform_4, window_bounds = array<i64: 8, 128>}, {transform_indices = @transform_5, window_bounds = array<i64: 1, 8, 128>}]} {
    %c0 = arith.constant 0 : index
    %c0_0 = arith.constant 0 : index
    %0 = vector.load %arg1[%c0, %c0_0] : memref<16x128xbf16, #tpu.memory_space<vmem>>, vector<16x128xbf16>
    %1 = arith.extf %0 : vector<16x128xbf16> to vector<16x128xf32>
    %c0_1 = arith.constant 0 : index
    %c0_2 = arith.constant 0 : index
    %2 = vector.load %arg2[%c0_1, %c0_2] : memref<128x1024xbf16, #tpu.memory_space<vmem>>, vector<128x1024xbf16>
    %cst = arith.constant dense<0.000000e+00> : vector<16x1024xf32>
    %3 = tpu.matmul %0, %2, %cst {dimension_numbers = #tpu.dot_dimension_numbers<[1], [0], [0], [1], [0, 0, 1, 1], [], []>} : vector<16x128xbf16>, vector<128x1024xbf16>, vector<16x1024xf32> -> vector<16x1024xf32>
    %c0_3 = arith.constant 0 : index
    %c0_4 = arith.constant 0 : index
    %4 = vector.load %arg3[%c0_3, %c0_4] : memref<1x1024xf32, #tpu.memory_space<vmem>>, vector<1x1024xf32>
    %5 = vector.broadcast %4 : vector<1x1024xf32> to vector<16x1024xf32>
    %6 = arith.subf %3, %5 : vector<16x1024xf32>
    %7 = arith.mulf %6, %6 : vector<16x1024xf32>
    %8 = arith.truncf %7 : vector<16x1024xf32> to vector<16x1024xbf16>
    %c0_5 = arith.constant 0 : index
    %c0_6 = arith.constant 0 : index
    %9 = vector.load %arg4[%c0_5, %c0_6] : memref<1024x8xbf16, #tpu.memory_space<vmem>>, vector<1024x8xbf16>
    %cst_7 = arith.constant dense<0.000000e+00> : vector<16x8xf32>
    %10 = tpu.matmul %8, %9, %cst_7 {dimension_numbers = #tpu.dot_dimension_numbers<[1], [0], [0], [1], [0, 0, 1, 1], [], []>} : vector<16x1024xbf16>, vector<1024x8xbf16>, vector<16x8xf32> -> vector<16x8xf32>
    %c3 = arith.constant 3 : index
    %c0_8 = arith.constant 0 : index
    %11 = vector.load %arg5[%c3, %c0_8] : memref<8x128xf32, #tpu.memory_space<vmem>>, vector<1x8xf32>
    %12 = vector.broadcast %11 : vector<1x8xf32> to vector<16x8xf32>
    %13 = arith.addf %10, %12 : vector<16x8xf32>
    %cst_9 = arith.constant dense<0x7F800000> : vector<16xf32>
    %14 = vector.multi_reduction <minimumf>, %13, %cst_9 [1] : vector<16x8xf32> to vector<16xf32>
    %15 = vector.shape_cast %14 : vector<16xf32> to vector<16x1xf32>
    %c0_10 = arith.constant 0 : index
    %c0_11 = arith.constant 0 : index
    %16 = vector.load %arg5[%c0_10, %c0_11] : memref<8x128xf32, #tpu.memory_space<vmem>>, vector<1x128xf32>
    %c1 = arith.constant 1 : index
    %c0_12 = arith.constant 0 : index
    %17 = vector.load %arg5[%c1, %c0_12] : memref<8x128xf32, #tpu.memory_space<vmem>>, vector<1x128xf32>
    %c2 = arith.constant 2 : index
    %c0_13 = arith.constant 0 : index
    %18 = vector.load %arg5[%c2, %c0_13] : memref<8x128xf32, #tpu.memory_space<vmem>>, vector<1x128xf32>
    %19 = vector.broadcast %17 : vector<1x128xf32> to vector<16x128xf32>
    %20 = arith.mulf %1, %19 : vector<16x128xf32>
    %21 = math.exp %20 : vector<16x128xf32>
    %22 = vector.broadcast %16 : vector<1x128xf32> to vector<16x128xf32>
    %23 = arith.mulf %22, %21 : vector<16x128xf32>
    %24 = vector.broadcast %18 : vector<1x128xf32> to vector<16x128xf32>
    %25 = arith.mulf %24, %1 : vector<16x128xf32>
    %26 = arith.mulf %25, %1 : vector<16x128xf32>
    %27 = arith.addf %23, %26 : vector<16x128xf32>
    %cst_14 = arith.constant dense<0.000000e+00> : vector<16xf32>
    %28 = vector.multi_reduction <add>, %27, %cst_14 [1] : vector<16x128xf32> to vector<16xf32>
    %29 = vector.shape_cast %28 : vector<16xf32> to vector<16x1xf32>
    %30 = vector.extract_strided_slice %1 {offsets = [0, 127], sizes = [16, 1], strides = [1, 1]} : vector<16x128xf32> to vector<16x1xf32>
    %31 = arith.addf %15, %29 : vector<16x1xf32>
    %32 = arith.mulf %30, %31 : vector<16x1xf32>
    %33 = vector.shape_cast %32 : vector<16x1xf32> to vector<1x16x1xf32>
    %cst_15 = arith.constant dense<0.000000e+00> : vector<1xf32>
    %34 = vector.multi_reduction <add>, %33, %cst_15 [1, 2] : vector<1x16x1xf32> to vector<1xf32>
    %35 = vector.shape_cast %34 : vector<1xf32> to vector<1x1x1xf32>
    %36 = vector.extract %35[0, 0, 0] : f32 from vector<1x1x1xf32>
    %cst_16 = arith.constant 0.000000e+00 : f32
    %37 = vector.broadcast %cst_16 : f32 to vector<1x8x128xf32>
    %38 = vector.broadcast %36 : f32 to vector<1x8x128xf32>
    %39 = arith.addf %37, %38 : vector<1x8x128xf32>
    %c0_17 = arith.constant 0 : index
    %c0_18 = arith.constant 0 : index
    %c0_19 = arith.constant 0 : index
    %40 = vector.load %arg6[%c0_17, %c0_18, %c0_19] : memref<1x8x128xf32, #tpu.memory_space<vmem>>, vector<1x8x128xf32>
    tpu.vector_store %arg6[%c0_17, %c0_18, %c0_19], %39 {strides = array<i32>} : memref<1x8x128xf32, #tpu.memory_space<vmem>>, vector<1x8x128xf32>,
    return
  }
  func.func @transform_0(%arg0: i32) -> (i32, i32) {
    %c0_i32 = arith.constant 0 : i32
    %c0_i32_0 = arith.constant 0 : i32
    return %arg0, %c0_i32 : i32, i32
  }
  func.func @transform_1(%arg0: i32) -> (i32, i32) {
    %c0_i32 = arith.constant 0 : i32
    %c0_i32_0 = arith.constant 0 : i32
    %c0_i32_1 = arith.constant 0 : i32
    return %c0_i32, %c0_i32_0 : i32, i32
  }
  func.func @transform_2(%arg0: i32) -> (i32, i32) {
    %c0_i32 = arith.constant 0 : i32
    %c0_i32_0 = arith.constant 0 : i32
    %c0_i32_1 = arith.constant 0 : i32
    return %c0_i32, %c0_i32_0 : i32, i32
  }
  func.func @transform_3(%arg0: i32) -> (i32, i32) {
    %c0_i32 = arith.constant 0 : i32
    %c0_i32_0 = arith.constant 0 : i32
    %c0_i32_1 = arith.constant 0 : i32
    return %c0_i32, %c0_i32_0 : i32, i32
  }
  func.func @transform_4(%arg0: i32) -> (i32, i32) {
    %c0_i32 = arith.constant 0 : i32
    %c0_i32_0 = arith.constant 0 : i32
    %c0_i32_1 = arith.constant 0 : i32
    return %c0_i32, %c0_i32_0 : i32, i32
  }
  func.func @transform_5(%arg0: i32) -> (i32, i32, i32) {
    %c0_i32 = arith.constant 0 : i32
    %c0_i32_0 = arith.constant 0 : i32
    %c0_i32_1 = arith.constant 0 : i32
    return %arg0, %c0_i32, %c0_i32_0 : i32, i32, i32
  }
}

</mosaic_0001>

<llo_original>
// kernel: prior_loss_pallas.1
$region0: #{prior_loss_pallas.1}
  #allocation0 [shape = 'u32[]', space=smem, size = 0x4, offset = 0x4, fixed_abs, tag = 'smem constant byte address 0x4 - core index']
  #allocation1 [shape = 'u32[144,128]{1,0:T(1,128)}', space=vmem, size = 0x12000, scoped, tag = 'internal scratch']
  %s0 = inlined_call_operand.vmem [shape: bf16[16,128], index: 0, kind: input, shape index: {}]
  %s1 = inlined_call_operand.vmem [shape: bf16[128,1024], index: 1, kind: input, shape index: {}]
  %s2 = inlined_call_operand.vmem [shape: f32[1,1024], index: 2, kind: input, shape index: {}]
  %s3 = inlined_call_operand.vmem [shape: bf16[1024,8], index: 3, kind: input, shape index: {}]
  %s4 = inlined_call_operand.vmem [shape: f32[8,128], index: 4, kind: input, shape index: {}]
  %s5 = inlined_call_operand.vmem [shape: f32[1,8,128], index: 5, kind: output, shape index: {}]
  %s6 = sld [smem:[#allocation0]]
  $region30: #{prior_loss_pallas.1} parent=0
    _
  %s8 = ssub.s32 1, %s6
  %s9 = scalar_select 0, %s8, %s6
  // Predicated region
  $region2: #{prior_loss_pallas.1} parent=0 // pred_check
    _
  $region3: #{prior_loss_pallas.1} parent=0 // pred_check_branch
    %11 = sbr.rel (0) target = $region5
  $region4: #{prior_loss_pallas.1} parent=0 // pred_region
    _
  $region5: #{prior_loss_pallas.1} parent=0 // pred_fallthru
    _
  // Predicated region
  $region6: #{prior_loss_pallas.1} parent=0 // pred_check
    _
  $region7: #{prior_loss_pallas.1} parent=0 // pred_check_branch
    %13 = sbr.rel (0) target = $region9
  $region8: #{prior_loss_pallas.1} parent=0 // pred_region
    _
  $region9: #{prior_loss_pallas.1} parent=0 // pred_fallthru
    _
  // Predicated region
  $region10: #{prior_loss_pallas.1} parent=0 // pred_check
    _
  $region11: #{prior_loss_pallas.1} parent=0 // pred_check_branch
    %15 = sbr.rel (0) target = $region13
  $region12: #{prior_loss_pallas.1} parent=0 // pred_region
    _
  $region13: #{prior_loss_pallas.1} parent=0 // pred_fallthru
    _
  // Predicated region
  $region14: #{prior_loss_pallas.1} parent=0 // pred_check
    _
  $region15: #{prior_loss_pallas.1} parent=0 // pred_check_branch
    %17 = sbr.rel (0) target = $region17
  $region16: #{prior_loss_pallas.1} parent=0 // pred_region
    _
  $region17: #{prior_loss_pallas.1} parent=0 // pred_fallthru
    _
  // Predicated region
  $region18: #{prior_loss_pallas.1} parent=0 // pred_check
    _
  $region19: #{prior_loss_pallas.1} parent=0 // pred_check_branch
    %19 = sbr.rel (0) target = $region21
  $region20: #{prior_loss_pallas.1} parent=0 // pred_region
    _
  $region21: #{prior_loss_pallas.1} parent=0 // pred_fallthru
    _
  %v21 = vld [vmem:[%s0] sm:$0xf]
  %v22 = vld [vmem:[%s0 + $0x4] sm:$0xf]
  %v23 = vunpack.c.l.bf16 %v21
  %v24 = vunpack.c.l.bf16 %v22
  %v25 = vld [vmem:[%s1] sm:$0xff]
  %v26 = vld [vmem:[%s1 + $0x8] sm:$0xff]
  %v27 = vld [vmem:[%s1 + $0x10] sm:$0xff]
  %v28 = vld [vmem:[%s1 + $0x18] sm:$0xff]
  %v29 = vld [vmem:[%s1 + $0x20] sm:$0xff]
  %v30 = vld [vmem:[%s1 + $0x28] sm:$0xff]
  %v31 = vld [vmem:[%s1 + $0x30] sm:$0xff]
  %v32 = vld [vmem:[%s1 + $0x38] sm:$0xff]
  %v33 = vld [vmem:[%s1 + $0x40] sm:$0xff]
  %v34 = vld [vmem:[%s1 + $0x48] sm:$0xff]
  %v35 = vld [vmem:[%s1 + $0x50] sm:$0xff]
  %v36 = vld [vmem:[%s1 + $0x58] sm:$0xff]
  %v37 = vld [vmem:[%s1 + $0x60] sm:$0xff]
  %v38 = vld [vmem:[%s1 + $0x68] sm:$0xff]
  %v39 = vld [vmem:[%s1 + $0x70] sm:$0xff]
  %v40 = vld [vmem:[%s1 + $0x78] sm:$0xff]
  %v41 = vld [vmem:[%s1 + $0x80] sm:$0xff]
  %v42 = vld [vmem:[%s1 + $0x88] sm:$0xff]
  %v43 = vld [vmem:[%s1 + $0x90] sm:$0xff]
  %v44 = vld [vmem:[%s1 + $0x98] sm:$0xff]
  %v45 = vld [vmem:[%s1 + $0xa0] sm:$0xff]
  %v46 = vld [vmem:[%s1 + $0xa8] sm:$0xff]
  %v47 = vld [vmem:[%s1 + $0xb0] sm:$0xff]
  %v48 = vld [vmem:[%s1 + $0xb8] sm:$0xff]
  %v49 = vld [vmem:[%s1 + $0xc0] sm:$0xff]
  %v50 = vld [vmem:[%s1 + $0xc8] sm:$0xff]
  %v51 = vld [vmem:[%s1 + $0xd0] sm:$0xff]
  %v52 = vld [vmem:[%s1 + $0xd8] sm:$0xff]
  %v53 = vld [vmem:[%s1 + $0xe0] sm:$0xff]
  %v54 = vld [vmem:[%s1 + $0xe8] sm:$0xff]
  %v55 = vld [vmem:[%s1 + $0xf0] sm:$0xff]
  %v56 = vld [vmem:[%s1 + $0xf8] sm:$0xff]
  %v57 = vld [vmem:[%s1 + $0x100] sm:$0xff]
  %v58 = vld [vmem:[%s1 + $0x108] sm:$0xff]
  %v59 = vld [vmem:[%s1 + $0x110] sm:$0xff]
  %v60 = vld [vmem:[%s1 + $0x118] sm:$0xff]
  %v61 = vld [vmem:[%s1 + $0x120] sm:$0xff]
  %v62 = vld [vmem:[%s1 + $0x128] sm:$0xff]
  %v63 = vld [vmem:[%s1 + $0x130] sm:$0xff]
  %v64 = vld [vmem:[%s1 + $0x138] sm:$0xff]
  %v65 = vld [vmem:[%s1 + $0x140] sm:$0xff]
  %v66 = vld [vmem:[%s1 + $0x148] sm:$0xff]
  %v67 = vld [vmem:[%s1 + $0x150] sm:$0xff]
  %v68 = vld [vmem:[%s1 + $0x158] sm:$0xff]
  %v69 = vld [vmem:[%s1 + $0x160] sm:$0xff]
  %v70 = vld [vmem:[%s1 + $0x168] sm:$0xff]
  %v71 = vld [vmem:[%s1 + $0x170] sm:$0xff]
  %v72 = vld [vmem:[%s1 + $0x178] sm:$0xff]
  %v73 = vld [vmem:[%s1 + $0x180] sm:$0xff]
  %v74 = vld [vmem:[%s1 + $0x188] sm:$0xff]
  %v75 = vld [vmem:[%s1 + $0x190] sm:$0xff]
  %v76 = vld [vmem:[%s1 + $0x198] sm:$0xff]
  %v77 = vld [vmem:[%s1 + $0x1a0] sm:$0xff]
  %v78 = vld [vmem:[%s1 + $0x1a8] sm:$0xff]
  %v79 = vld [vmem:[%s1 + $0x1b0] sm:$0xff]
  %v80 = vld [vmem:[%s1 + $0x1b8] sm:$0xff]
  %v81 = vld [vmem:[%s1 + $0x1c0] sm:$0xff]
  %v82 = vld [vmem:[%s1 + $0x1c8] sm:$0xff]
  %v83 = vld [vmem:[%s1 + $0x1d0] sm:$0xff]
  %v84 = vld [vmem:[%s1 + $0x1d8] sm:$0xff]
  %v85 = vld [vmem:[%s1 + $0x1e0] sm:$0xff]
  %v86 = vld [vmem:[%s1 + $0x1e8] sm:$0xff]
  %v87 = vld [vmem:[%s1 + $0x1f0] sm:$0xff]
  %v88 = vld [vmem:[%s1 + $0x1f8] sm:$0xff]
  %v91 = vunpack.c.l.b16 %v21
  %v92 = vunpack.c.l.b16 %v22
  %v93 = vpack.c.b16 %v92, %v91
  %v159 = vunpack.c.l.b16 %v25
  %v160 = vunpack.c.h.b16 %v25
  %v161 = vunpack.c.l.b16 %v26
  %v162 = vunpack.c.h.b16 %v26
  %v163 = vunpack.c.l.b16 %v27
  %v164 = vunpack.c.h.b16 %v27
  %v165 = vunpack.c.l.b16 %v28
  %v166 = vunpack.c.h.b16 %v28
  %v167 = vunpack.c.l.b16 %v29
  %v168 = vunpack.c.h.b16 %v29
  %v169 = vunpack.c.l.b16 %v30
  %v170 = vunpack.c.h.b16 %v30
  %v171 = vunpack.c.l.b16 %v31
  %v172 = vunpack.c.h.b16 %v31
  %v173 = vunpack.c.l.b16 %v32
  %v174 = vunpack.c.h.b16 %v32
  %v175 = vunpack.c.l.b16 %v33
  %v176 = vunpack.c.h.b16 %v33
  %v177 = vunpack.c.l.b16 %v34
  %v178 = vunpack.c.h.b16 %v34
  %v179 = vunpack.c.l.b16 %v35
  %v180 = vunpack.c.h.b16 %v35
  %v181 = vunpack.c.l.b16 %v36
  %v182 = vunpack.c.h.b16 %v36
  %v183 = vunpack.c.l.b16 %v37
  %v184 = vunpack.c.h.b16 %v37
  %v185 = vunpack.c.l.b16 %v38
  %v186 = vunpack.c.h.b16 %v38
  %v187 = vunpack.c.l.b16 %v39
  %v188 = vunpack.c.h.b16 %v39
  %v189 = vunpack.c.l.b16 %v40
  %v190 = vunpack.c.h.b16 %v40
  %v191 = vunpack.c.l.b16 %v41
  %v192 = vunpack.c.h.b16 %v41
  %v193 = vunpack.c.l.b16 %v42
  %v194 = vunpack.c.h.b16 %v42
  %v195 = vunpack.c.l.b16 %v43
  %v196 = vunpack.c.h.b16 %v43
  %v197 = vunpack.c.l.b16 %v44
  %v198 = vunpack.c.h.b16 %v44
  %v199 = vunpack.c.l.b16 %v45
  %v200 = vunpack.c.h.b16 %v45
  %v201 = vunpack.c.l.b16 %v46
  %v202 = vunpack.c.h.b16 %v46
  %v203 = vunpack.c.l.b16 %v47
  %v204 = vunpack.c.h.b16 %v47
  %v205 = vunpack.c.l.b16 %v48
  %v206 = vunpack.c.h.b16 %v48
  %v207 = vunpack.c.l.b16 %v49
  %v208 = vunpack.c.h.b16 %v49
  %v209 = vunpack.c.l.b16 %v50
  %v210 = vunpack.c.h.b16 %v50
  %v211 = vunpack.c.l.b16 %v51
  %v212 = vunpack.c.h.b16 %v51
  %v213 = vunpack.c.l.b16 %v52
  %v214 = vunpack.c.h.b16 %v52
  %v215 = vunpack.c.l.b16 %v53
  %v216 = vunpack.c.h.b16 %v53
  %v217 = vunpack.c.l.b16 %v54
  %v218 = vunpack.c.h.b16 %v54
  %v219 = vunpack.c.l.b16 %v55
  %v220 = vunpack.c.h.b16 %v55
  %v221 = vunpack.c.l.b16 %v56
  %v222 = vunpack.c.h.b16 %v56
  %v223 = vunpack.c.l.b16 %v57
  %v224 = vunpack.c.h.b16 %v57
  %v225 = vunpack.c.l.b16 %v58
  %v226 = vunpack.c.h.b16 %v58
  %v227 = vunpack.c.l.b16 %v59
  %v228 = vunpack.c.h.b16 %v59
  %v229 = vunpack.c.l.b16 %v60
  %v230 = vunpack.c.h.b16 %v60
  %v231 = vunpack.c.l.b16 %v61
  %v232 = vunpack.c.h.b16 %v61
  %v233 = vunpack.c.l.b16 %v62
  %v234 = vunpack.c.h.b16 %v62
  %v235 = vunpack.c.l.b16 %v63
  %v236 = vunpack.c.h.b16 %v63
  %v237 = vunpack.c.l.b16 %v64
  %v238 = vunpack.c.h.b16 %v64
  %v239 = vunpack.c.l.b16 %v65
  %v240 = vunpack.c.h.b16 %v65
  %v241 = vunpack.c.l.b16 %v66
  %v242 = vunpack.c.h.b16 %v66
  %v243 = vunpack.c.l.b16 %v67
  %v244 = vunpack.c.h.b16 %v67
  %v245 = vunpack.c.l.b16 %v68
  %v246 = vunpack.c.h.b16 %v68
  %v247 = vunpack.c.l.b16 %v69
  %v248 = vunpack.c.h.b16 %v69
  %v249 = vunpack.c.l.b16 %v70
  %v250 = vunpack.c.h.b16 %v70
  %v251 = vunpack.c.l.b16 %v71
  %v252 = vunpack.c.h.b16 %v71
  %v253 = vunpack.c.l.b16 %v72
  %v254 = vunpack.c.h.b16 %v72
  %v255 = vunpack.c.l.b16 %v73
  %v256 = vunpack.c.h.b16 %v73
  %v257 = vunpack.c.l.b16 %v74
  %v258 = vunpack.c.h.b16 %v74
  %v259 = vunpack.c.l.b16 %v75
  %v260 = vunpack.c.h.b16 %v75
  %v261 = vunpack.c.l.b16 %v76
  %v262 = vunpack.c.h.b16 %v76
  %v263 = vunpack.c.l.b16 %v77
  %v264 = vunpack.c.h.b16 %v77
  %v265 = vunpack.c.l.b16 %v78
  %v266 = vunpack.c.h.b16 %v78
  %v267 = vunpack.c.l.b16 %v79
  %v268 = vunpack.c.h.b16 %v79
  %v269 = vunpack.c.l.b16 %v80
  %v270 = vunpack.c.h.b16 %v80
  %v271 = vunpack.c.l.b16 %v81
  %v272 = vunpack.c.h.b16 %v81
  %v273 = vunpack.c.l.b16 %v82
  %v274 = vunpack.c.h.b16 %v82
  %v275 = vunpack.c.l.b16 %v83
  %v276 = vunpack.c.h.b16 %v83
  %v277 = vunpack.c.l.b16 %v84
  %v278 = vunpack.c.h.b16 %v84
  %v279 = vunpack.c.l.b16 %v85
  %v280 = vunpack.c.h.b16 %v85
  %v281 = vunpack.c.l.b16 %v86
  %v282 = vunpack.c.h.b16 %v86
  %v283 = vunpack.c.l.b16 %v87
  %v284 = vunpack.c.h.b16 %v87
  %v285 = vunpack.c.l.b16 %v88
  %v286 = vunpack.c.h.b16 %v88
  %v287 = vpack.c.b16 %v167, %v159
  %v288 = vpack.c.b16 %v168, %v160
  %v289 = vpack.c.b16 %v169, %v161
  %v290 = vpack.c.b16 %v170, %v162
  %v291 = vpack.c.b16 %v171, %v163
  %v292 = vpack.c.b16 %v172, %v164
  %v293 = vpack.c.b16 %v173, %v165
  %v294 = vpack.c.b16 %v174, %v166
  %v295 = vpack.c.b16 %v183, %v175
  %v296 = vpack.c.b16 %v184, %v176
  %v297 = vpack.c.b16 %v185, %v177
  %v298 = vpack.c.b16 %v186, %v178
  %v299 = vpack.c.b16 %v187, %v179
  %v300 = vpack.c.b16 %v188, %v180
  %v301 = vpack.c.b16 %v189, %v181
  %v302 = vpack.c.b16 %v190, %v182
  %v303 = vpack.c.b16 %v199, %v191
  %v304 = vpack.c.b16 %v200, %v192
  %v305 = vpack.c.b16 %v201, %v193
  %v306 = vpack.c.b16 %v202, %v194
  %v307 = vpack.c.b16 %v203, %v195
  %v308 = vpack.c.b16 %v204, %v196
  %v309 = vpack.c.b16 %v205, %v197
  %v310 = vpack.c.b16 %v206, %v198
  %v311 = vpack.c.b16 %v215, %v207
  %v312 = vpack.c.b16 %v216, %v208
  %v313 = vpack.c.b16 %v217, %v209
  %v314 = vpack.c.b16 %v218, %v210
  %v315 = vpack.c.b16 %v219, %v211
  %v316 = vpack.c.b16 %v220, %v212
  %v317 = vpack.c.b16 %v221, %v213
  %v318 = vpack.c.b16 %v222, %v214
  %v319 = vpack.c.b16 %v231, %v223
  %v320 = vpack.c.b16 %v232, %v224
  %v321 = vpack.c.b16 %v233, %v225
  %v322 = vpack.c.b16 %v234, %v226
  %v323 = vpack.c.b16 %v235, %v227
  %v324 = vpack.c.b16 %v236, %v228
  %v325 = vpack.c.b16 %v237, %v229
  %v326 = vpack.c.b16 %v238, %v230
  %v327 = vpack.c.b16 %v247, %v239
  %v328 = vpack.c.b16 %v248, %v240
  %v329 = vpack.c.b16 %v249, %v241
  %v330 = vpack.c.b16 %v250, %v242
  %v331 = vpack.c.b16 %v251, %v243
  %v332 = vpack.c.b16 %v252, %v244
  %v333 = vpack.c.b16 %v253, %v245
  %v334 = vpack.c.b16 %v254, %v246
  %v335 = vpack.c.b16 %v263, %v255
  %v336 = vpack.c.b16 %v264, %v256
  %v337 = vpack.c.b16 %v265, %v257
  %v338 = vpack.c.b16 %v266, %v258
  %v339 = vpack.c.b16 %v267, %v259
  %v340 = vpack.c.b16 %v268, %v260
  %v341 = vpack.c.b16 %v269, %v261
  %v342 = vpack.c.b16 %v270, %v262
  %v343 = vpack.c.b16 %v279, %v271
  %v344 = vpack.c.b16 %v280, %v272
  %v345 = vpack.c.b16 %v281, %v273
  %v346 = vpack.c.b16 %v282, %v274
  %v347 = vpack.c.b16 %v283, %v275
  %v348 = vpack.c.b16 %v284, %v276
  %v349 = vpack.c.b16 %v285, %v277
  %v350 = vpack.c.b16 %v286, %v278
  %415 = vmatprep.subr.bf16.mxu0 %v288
  %416 = vmatpush1.bf16.msra.mxu0 %v287
  %417 = vmatprep.subr.bf16.mxu0 %v296
  %418 = vmatpush1.bf16.msra.mxu0 %v295
  %419 = vmatprep.subr.bf16.mxu0 %v304
  %420 = vmatpush1.bf16.msra.mxu0 %v303
  %421 = vmatprep.subr.bf16.mxu0 %v312
  %422 = vmatpush1.bf16.msra.mxu0 %v311
  %423 = vmatprep.subr.bf16.mxu0 %v320
  %424 = vmatpush1.bf16.msra.mxu0 %v319
  %425 = vmatprep.subr.bf16.mxu0 %v328
  %426 = vmatpush1.bf16.msra.mxu0 %v327
  %427 = vmatprep.subr.bf16.mxu0 %v336
  %428 = vmatpush1.bf16.msra.mxu0 %v335
  %429 = vmatprep.subr.bf16.mxu0 %v344
  %430 = vmatpush1.bf16.msra.mxu0 %v343
  %431 = vmatprep.subr.bf16.mxu0 0
  %432 = vmatpush1.bf16.msra.mxu0 0
  %433 = vmatprep.subr.bf16.mxu0 0
  %434 = vmatpush1.bf16.msra.mxu0 0
  %435 = vmatprep.subr.bf16.mxu0 0
  %436 = vmatpush1.bf16.msra.mxu0 0
  %437 = vmatprep.subr.bf16.mxu0 0
  %438 = vmatpush1.bf16.msra.mxu0 0
  %439 = vmatprep.subr.bf16.mxu0 0
  %440 = vmatpush1.bf16.msra.mxu0 0
  %441 = vmatprep.subr.bf16.mxu0 0
  %442 = vmatpush1.bf16.msra.mxu0 0
  %443 = vmatprep.subr.bf16.mxu0 0
  %444 = vmatpush1.bf16.msra.mxu0 0
  %445 = vmatprep.subr.bf16.mxu0 0
  %446 = vmatpush1.bf16.msra.mxu0 0
  %447 = vmatprep.mubr.bf16.mxu0 0
  %448 = vmatmul.mubr.bf16.gmra.mrb[0].mxu0 %v93
  %v449 = vpop.f32.mrb[0].mxu0
  %v450 = vadd.f32 0.0, %v449
  %v451 = vpop.f32.mrb[0].mxu0
  %v452 = vadd.f32 0.0, %v451
  %v453 = vpop.f32.mrb[0].mxu0
  %v454 = vadd.f32 0.0, %v453
  %v455 = vpop.f32.mrb[0].mxu0
  %v456 = vadd.f32 0.0, %v455
  %457 = vdwg.mxu0
  %458 = vmatprep.subr.bf16.mxu0 %v290
  %459 = vmatpush1.bf16.msra.mxu0 %v289
  %460 = vmatprep.subr.bf16.mxu0 %v298
  %461 = vmatpush1.bf16.msra.mxu0 %v297
  %462 = vmatprep.subr.bf16.mxu0 %v306
  %463 = vmatpush1.bf16.msra.mxu0 %v305
  %464 = vmatprep.subr.bf16.mxu0 %v314
  %465 = vmatpush1.bf16.msra.mxu0 %v313
  %466 = vmatprep.subr.bf16.mxu0 %v322
  %467 = vmatpush1.bf16.msra.mxu0 %v321
  %468 = vmatprep.subr.bf16.mxu0 %v330
  %469 = vmatpush1.bf16.msra.mxu0 %v329
  %470 = vmatprep.subr.bf16.mxu0 %v338
  %471 = vmatpush1.bf16.msra.mxu0 %v337
  %472 = vmatprep.subr.bf16.mxu0 %v346
  %473 = vmatpush1.bf16.msra.mxu0 %v345
  %474 = vmatprep.subr.bf16.mxu0 0
  %475 = vmatpush1.bf16.msra.mxu0 0
  %476 = vmatprep.subr.bf16.mxu0 0
  %477 = vmatpush1.bf16.msra.mxu0 0
  %478 = vmatprep.subr.bf16.mxu0 0
  %479 = vmatpush1.bf16.msra.mxu0 0
  %480 = vmatprep.subr.bf16.mxu0 0
  %481 = vmatpush1.bf16.msra.mxu0 0
  %482 = vmatprep.subr.bf16.mxu0 0
  %483 = vmatpush1.bf16.msra.mxu0 0
  %484 = vmatprep.subr.bf16.mxu0 0
  %485 = vmatpush1.bf16.msra.mxu0 0
  %486 = vmatprep.subr.bf16.mxu0 0
  %487 = vmatpush1.bf16.msra.mxu0 0
  %488 = vmatprep.subr.bf16.mxu0 0
  %489 = vmatpush1.bf16.msra.mxu0 0
  %490 = vmatprep.mubr.bf16.mxu0 0
  %491 = vmatmul.mubr.bf16.gmra.mrb[0].mxu0 %v93
  %v492 = vpop.f32.mrb[0].mxu0
  %v493 = vadd.f32 0.0, %v492
  %v494 = vpop.f32.mrb[0].mxu0
  %v495 = vadd.f32 0.0, %v494
  %v496 = vpop.f32.mrb[0].mxu0
  %v497 = vadd.f32 0.0, %v496
  %v498 = vpop.f32.mrb[0].mxu0
  %v499 = vadd.f32 0.0, %v498
  %500 = vdwg.mxu0
  %501 = vmatprep.subr.bf16.mxu0 %v292
  %502 = vmatpush1.bf16.msra.mxu0 %v291
  %503 = vmatprep.subr.bf16.mxu0 %v300
  %504 = vmatpush1.bf16.msra.mxu0 %v299
  %505 = vmatprep.subr.bf16.mxu0 %v308
  %506 = vmatpush1.bf16.msra.mxu0 %v307
  %507 = vmatprep.subr.bf16.mxu0 %v316
  %508 = vmatpush1.bf16.msra.mxu0 %v315
  %509 = vmatprep.subr.bf16.mxu0 %v324
  %510 = vmatpush1.bf16.msra.mxu0 %v323
  %511 = vmatprep.subr.bf16.mxu0 %v332
  %512 = vmatpush1.bf16.msra.mxu0 %v331
  %513 = vmatprep.subr.bf16.mxu0 %v340
  %514 = vmatpush1.bf16.msra.mxu0 %v339
  %515 = vmatprep.subr.bf16.mxu0 %v348
  %516 = vmatpush1.bf16.msra.mxu0 %v347
  %517 = vmatprep.subr.bf16.mxu0 0
  %518 = vmatpush1.bf16.msra.mxu0 0
  %519 = vmatprep.subr.bf16.mxu0 0
  %520 = vmatpush1.bf16.msra.mxu0 0
  %521 = vmatprep.subr.bf16.mxu0 0
  %522 = vmatpush1.bf16.msra.mxu0 0
  %523 = vmatprep.subr.bf16.mxu0 0
  %524 = vmatpush1.bf16.msra.mxu0 0
  %525 = vmatprep.subr.bf16.mxu0 0
  %526 = vmatpush1.bf16.msra.mxu0 0
  %527 = vmatprep.subr.bf16.mxu0 0
  %528 = vmatpush1.bf16.msra.mxu0 0
  %529 = vmatprep.subr.bf16.mxu0 0
  %530 = vmatpush1.bf16.msra.mxu0 0
  %531 = vmatprep.subr.bf16.mxu0 0
  %532 = vmatpush1.bf16.msra.mxu0 0
  %533 = vmatprep.mubr.bf16.mxu0 0
  %534 = vmatmul.mubr.bf16.gmra.mrb[0].mxu0 %v93
  %v535 = vpop.f32.mrb[0].mxu0
  %v536 = vadd.f32 0.0, %v535
  %v537 = vpop.f32.mrb[0].mxu0
  %v538 = vadd.f32 0.0, %v537
  %v539 = vpop.f32.mrb[0].mxu0
  %v540 = vadd.f32 0.0, %v539
  %v541 = vpop.f32.mrb[0].mxu0
  %v542 = vadd.f32 0.0, %v541
  %543 = vdwg.mxu0
  %544 = vmatprep.subr.bf16.mxu0 %v294
  %545 = vmatpush1.bf16.msra.mxu0 %v293
  %546 = vmatprep.subr.bf16.mxu0 %v302
  %547 = vmatpush1.bf16.msra.mxu0 %v301
  %548 = vmatprep.subr.bf16.mxu0 %v310
  %549 = vmatpush1.bf16.msra.mxu0 %v309
  %550 = vmatprep.subr.bf16.mxu0 %v318
  %551 = vmatpush1.bf16.msra.mxu0 %v317
  %552 = vmatprep.subr.bf16.mxu0 %v326
  %553 = vmatpush1.bf16.msra.mxu0 %v325
  %554 = vmatprep.subr.bf16.mxu0 %v334
  %555 = vmatpush1.bf16.msra.mxu0 %v333
  %556 = vmatprep.subr.bf16.mxu0 %v342
  %557 = vmatpush1.bf16.msra.mxu0 %v341
  %558 = vmatprep.subr.bf16.mxu0 %v350
  %559 = vmatpush1.bf16.msra.mxu0 %v349
  %560 = vmatprep.subr.bf16.mxu0 0
  %561 = vmatpush1.bf16.msra.mxu0 0
  %562 = vmatprep.subr.bf16.mxu0 0
  %563 = vmatpush1.bf16.msra.mxu0 0
  %564 = vmatprep.subr.bf16.mxu0 0
  %565 = vmatpush1.bf16.msra.mxu0 0
  %566 = vmatprep.subr.bf16.mxu0 0
  %567 = vmatpush1.bf16.msra.mxu0 0
  %568 = vmatprep.subr.bf16.mxu0 0
  %569 = vmatpush1.bf16.msra.mxu0 0
  %570 = vmatprep.subr.bf16.mxu0 0
  %571 = vmatpush1.bf16.msra.mxu0 0
  %572 = vmatprep.subr.bf16.mxu0 0
  %573 = vmatpush1.bf16.msra.mxu0 0
  %574 = vmatprep.subr.bf16.mxu0 0
  %575 = vmatpush1.bf16.msra.mxu0 0
  %576 = vmatprep.mubr.bf16.mxu0 0
  %577 = vmatmul.mubr.bf16.gmra.mrb[0].mxu0 %v93
  %v578 = vpop.f32.mrb[0].mxu0
  %v579 = vadd.f32 0.0, %v578
  %v580 = vpop.f32.mrb[0].mxu0
  %v581 = vadd.f32 0.0, %v580
  %v582 = vpop.f32.mrb[0].mxu0
  %v583 = vadd.f32 0.0, %v582
  %v584 = vpop.f32.mrb[0].mxu0
  %v585 = vadd.f32 0.0, %v584
  %586 = vdwg.mxu0
  %v587 = vld [vmem:[%s2] sm:$0xff]
  %v589 = vlaneseq
  %v590 = vshrl.u32 %v589, 7
  %v591 = vsub.s32 0, %v590
  %v592 = vrot.slane %v587, %v591
  %v593 = vlaneseq
  %v594 = vshrl.u32 %v593, 7
  %v595 = vsub.s32 1, %v594
  %v596 = vrot.slane %v587, %v595
  %v597 = vlaneseq
  %v598 = vshrl.u32 %v597, 7
  %v599 = vsub.s32 2, %v598
  %v600 = vrot.slane %v587, %v599
  %v601 = vlaneseq
  %v602 = vshrl.u32 %v601, 7
  %v603 = vsub.s32 3, %v602
  %v604 = vrot.slane %v587, %v603
  %v605 = vlaneseq
  %v606 = vshrl.u32 %v605, 7
  %v607 = vsub.s32 4, %v606
  %v608 = vrot.slane %v587, %v607
  %v609 = vlaneseq
  %v610 = vshrl.u32 %v609, 7
  %v611 = vsub.s32 5, %v610
  %v612 = vrot.slane %v587, %v611
  %v613 = vlaneseq
  %v614 = vshrl.u32 %v613, 7
  %v615 = vsub.s32 6, %v614
  %v616 = vrot.slane %v587, %v615
  %v617 = vlaneseq
  %v618 = vshrl.u32 %v617, 7
  %v619 = vsub.s32 7, %v618
  %v620 = vrot.slane %v587, %v619
  %v629 = vsub.f32 %v450, %v592
  %v630 = vsub.f32 %v452, %v596
  %v631 = vsub.f32 %v493, %v600
  %v632 = vsub.f32 %v495, %v604
  %v633 = vsub.f32 %v536, %v608
  %v634 = vsub.f32 %v538, %v612
  %v635 = vsub.f32 %v579, %v616
  %v636 = vsub.f32 %v581, %v620
  %v637 = vsub.f32 %v454, %v592
  %v638 = vsub.f32 %v456, %v596
  %v639 = vsub.f32 %v497, %v600
  %v640 = vsub.f32 %v499, %v604
  %v641 = vsub.f32 %v540, %v608
  %v642 = vsub.f32 %v542, %v612
  %v643 = vsub.f32 %v583, %v616
  %v644 = vsub.f32 %v585, %v620
  %v645 = vmul.f32 %v629, %v629
  %v646 = vmul.f32 %v630, %v630
  %v647 = vmul.f32 %v631, %v631
  %v648 = vmul.f32 %v632, %v632
  %v649 = vmul.f32 %v633, %v633
  %v650 = vmul.f32 %v634, %v634
  %v651 = vmul.f32 %v635, %v635
  %v652 = vmul.f32 %v636, %v636
  %v653 = vmul.f32 %v637, %v637
  %v654 = vmul.f32 %v638, %v638
  %v655 = vmul.f32 %v639, %v639
  %v656 = vmul.f32 %v640, %v640
  %v657 = vmul.f32 %v641, %v641
  %v658 = vmul.f32 %v642, %v642
  %v659 = vmul.f32 %v643, %v643
  %v660 = vmul.f32 %v644, %v644
  %v661 = vpack.c.bf16 %v653, %v645
  %v662 = vpack.c.bf16 %v654, %v646
  %v663 = vpack.c.bf16 %v655, %v647
  %v664 = vpack.c.bf16 %v656, %v648
  %v665 = vpack.c.bf16 %v657, %v649
  %v666 = vpack.c.bf16 %v658, %v650
  %v667 = vpack.c.bf16 %v659, %v651
  %v668 = vpack.c.bf16 %v660, %v652
  %v669 = vld [vmem:[%s3] sm:$0xf]
  %v670 = vld [vmem:[%s3 + $0x4] sm:$0xf]
  %v671 = vld [vmem:[%s3 + $0x8] sm:$0xf]
  %v672 = vld [vmem:[%s3 + $0xc] sm:$0xf]
  %v673 = vld [vmem:[%s3 + $0x10] sm:$0xf]
  %v674 = vld [vmem:[%s3 + $0x14] sm:$0xf]
  %v675 = vld [vmem:[%s3 + $0x18] sm:$0xf]
  %v676 = vld [vmem:[%s3 + $0x1c] sm:$0xf]
  %v677 = vld [vmem:[%s3 + $0x20] sm:$0xf]
  %v678 = vld [vmem:[%s3 + $0x24] sm:$0xf]
  %v679 = vld [vmem:[%s3 + $0x28] sm:$0xf]
  %v680 = vld [vmem:[%s3 + $0x2c] sm:$0xf]
  %v681 = vld [vmem:[%s3 + $0x30] sm:$0xf]
  %v682 = vld [vmem:[%s3 + $0x34] sm:$0xf]
  %v683 = vld [vmem:[%s3 + $0x38] sm:$0xf]
  %v684 = vld [vmem:[%s3 + $0x3c] sm:$0xf]
  %v685 = vld [vmem:[%s3 + $0x40] sm:$0xf]
  %v686 = vld [vmem:[%s3 + $0x44] sm:$0xf]
  %v687 = vld [vmem:[%s3 + $0x48] sm:$0xf]
  %v688 = vld [vmem:[%s3 + $0x4c] sm:$0xf]
  %v689 = vld [vmem:[%s3 + $0x50] sm:$0xf]
  %v690 = vld [vmem:[%s3 + $0x54] sm:$0xf]
  %v691 = vld [vmem:[%s3 + $0x58] sm:$0xf]
  %v692 = vld [vmem:[%s3 + $0x5c] sm:$0xf]
  %v693 = vld [vmem:[%s3 + $0x60] sm:$0xf]
  %v694 = vld [vmem:[%s3 + $0x64] sm:$0xf]
  %v695 = vld [vmem:[%s3 + $0x68] sm:$0xf]
  %v696 = vld [vmem:[%s3 + $0x6c] sm:$0xf]
  %v697 = vld [vmem:[%s3 + $0x70] sm:$0xf]
  %v698 = vld [vmem:[%s3 + $0x74] sm:$0xf]
  %v699 = vld [vmem:[%s3 + $0x78] sm:$0xf]
  %v700 = vld [vmem:[%s3 + $0x7c] sm:$0xf]
  %v701 = vld [vmem:[%s3 + $0x80] sm:$0xf]
  %v702 = vld [vmem:[%s3 + $0x84] sm:$0xf]
  %v703 = vld [vmem:[%s3 + $0x88] sm:$0xf]
  %v704 = vld [vmem:[%s3 + $0x8c] sm:$0xf]
  %v705 = vld [vmem:[%s3 + $0x90] sm:$0xf]
  %v706 = vld [vmem:[%s3 + $0x94] sm:$0xf]
  %v707 = vld [vmem:[%s3 + $0x98] sm:$0xf]
  %v708 = vld [vmem:[%s3 + $0x9c] sm:$0xf]
  %v709 = vld [vmem:[%s3 + $0xa0] sm:$0xf]
  %v710 = vld [vmem:[%s3 + $0xa4] sm:$0xf]
  %v711 = vld [vmem:[%s3 + $0xa8] sm:$0xf]
  %v712 = vld [vmem:[%s3 + $0xac] sm:$0xf]
  %v713 = vld [vmem:[%s3 + $0xb0] sm:$0xf]
  %v714 = vld [vmem:[%s3 + $0xb4] sm:$0xf]
  %v715 = vld [vmem:[%s3 + $0xb8] sm:$0xf]
  %v716 = vld [vmem:[%s3 + $0xbc] sm:$0xf]
  %v717 = vld [vmem:[%s3 + $0xc0] sm:$0xf]
  %v718 = vld [vmem:[%s3 + $0xc4] sm:$0xf]
  %v719 = vld [vmem:[%s3 + $0xc8] sm:$0xf]
  %v720 = vld [vmem:[%s3 + $0xcc] sm:$0xf]
  %v721 = vld [vmem:[%s3 + $0xd0] sm:$0xf]
  %v722 = vld [vmem:[%s3 + $0xd4] sm:$0xf]
  %v723 = vld [vmem:[%s3 + $0xd8] sm:$0xf]
  %v724 = vld [vmem:[%s3 + $0xdc] sm:$0xf]
  %v725 = vld [vmem:[%s3 + $0xe0] sm:$0xf]
  %v726 = vld [vmem:[%s3 + $0xe4] sm:$0xf]
  %v727 = vld [vmem:[%s3 + $0xe8] sm:$0xf]
  %v728 = vld [vmem:[%s3 + $0xec] sm:$0xf]
  %v729 = vld [vmem:[%s3 + $0xf0] sm:$0xf]
  %v730 = vld [vmem:[%s3 + $0xf4] sm:$0xf]
  %v731 = vld [vmem:[%s3 + $0xf8] sm:$0xf]
  %v732 = vld [vmem:[%s3 + $0xfc] sm:$0xf]
  %v733 = vld [vmem:[%s3 + $0x100] sm:$0xf]
  %v734 = vld [vmem:[%s3 + $0x104] sm:$0xf]
  %v735 = vld [vmem:[%s3 + $0x108] sm:$0xf]
  %v736 = vld [vmem:[%s3 + $0x10c] sm:$0xf]
  %v737 = vld [vmem:[%s3 + $0x110] sm:$0xf]
  %v738 = vld [vmem:[%s3 + $0x114] sm:$0xf]
  %v739 = vld [vmem:[%s3 + $0x118] sm:$0xf]
  %v740 = vld [vmem:[%s3 + $0x11c] sm:$0xf]
  %v741 = vld [vmem:[%s3 + $0x120] sm:$0xf]
  %v742 = vld [vmem:[%s3 + $0x124] sm:$0xf]
  %v743 = vld [vmem:[%s3 + $0x128] sm:$0xf]
  %v744 = vld [vmem:[%s3 + $0x12c] sm:$0xf]
  %v745 = vld [vmem:[%s3 + $0x130] sm:$0xf]
  %v746 = vld [vmem:[%s3 + $0x134] sm:$0xf]
  %v747 = vld [vmem:[%s3 + $0x138] sm:$0xf]
  %v748 = vld [vmem:[%s3 + $0x13c] sm:$0xf]
  %v749 = vld [vmem:[%s3 + $0x140] sm:$0xf]
  %v750 = vld [vmem:[%s3 + $0x144] sm:$0xf]
  %v751 = vld [vmem:[%s3 + $0x148] sm:$0xf]
  %v752 = vld [vmem:[%s3 + $0x14c] sm:$0xf]
  %v753 = vld [vmem:[%s3 + $0x150] sm:$0xf]
  %v754 = vld [vmem:[%s3 + $0x154] sm:$0xf]
  %v755 = vld [vmem:[%s3 + $0x158] sm:$0xf]
  %v756 = vld [vmem:[%s3 + $0x15c] sm:$0xf]
  %v757 = vld [vmem:[%s3 + $0x160] sm:$0xf]
  %v758 = vld [vmem:[%s3 + $0x164] sm:$0xf]
  %v759 = vld [vmem:[%s3 + $0x168] sm:$0xf]
  %v760 = vld [vmem:[%s3 + $0x16c] sm:$0xf]
  %v761 = vld [vmem:[%s3 + $0x170] sm:$0xf]
  %v762 = vld [vmem:[%s3 + $0x174] sm:$0xf]
  %v763 = vld [vmem:[%s3 + $0x178] sm:$0xf]
  %v764 = vld [vmem:[%s3 + $0x17c] sm:$0xf]
  %v765 = vld [vmem:[%s3 + $0x180] sm:$0xf]
  %v766 = vld [vmem:[%s3 + $0x184] sm:$0xf]
  %v767 = vld [vmem:[%s3 + $0x188] sm:$0xf]
  %v768 = vld [vmem:[%s3 + $0x18c] sm:$0xf]
  %v769 = vld [vmem:[%s3 + $0x190] sm:$0xf]
  %v770 = vld [vmem:[%s3 + $0x194] sm:$0xf]
  %v771 = vld [vmem:[%s3 + $0x198] sm:$0xf]
  %v772 = vld [vmem:[%s3 + $0x19c] sm:$0xf]
  %v773 = vld [vmem:[%s3 + $0x1a0] sm:$0xf]
  %v774 = vld [vmem:[%s3 + $0x1a4] sm:$0xf]
  %v775 = vld [vmem:[%s3 + $0x1a8] sm:$0xf]
  %v776 = vld [vmem:[%s3 + $0x1ac] sm:$0xf]
  %v777 = vld [vmem:[%s3 + $0x1b0] sm:$0xf]
  %v778 = vld [vmem:[%s3 + $0x1b4] sm:$0xf]
  %v779 = vld [vmem:[%s3 + $0x1b8] sm:$0xf]
  %v780 = vld [vmem:[%s3 + $0x1bc] sm:$0xf]
  %v781 = vld [vmem:[%s3 + $0x1c0] sm:$0xf]
  %v782 = vld [vmem:[%s3 + $0x1c4] sm:$0xf]
  %v783 = vld [vmem:[%s3 + $0x1c8] sm:$0xf]
  %v784 = vld [vmem:[%s3 + $0x1cc] sm:$0xf]
  %v785 = vld [vmem:[%s3 + $0x1d0] sm:$0xf]
  %v786 = vld [vmem:[%s3 + $0x1d4] sm:$0xf]
  %v787 = vld [vmem:[%s3 + $0x1d8] sm:$0xf]
  %v788 = vld [vmem:[%s3 + $0x1dc] sm:$0xf]
  %v789 = vld [vmem:[%s3 + $0x1e0] sm:$0xf]
  %v790 = vld [vmem:[%s3 + $0x1e4] sm:$0xf]
  %v791 = vld [vmem:[%s3 + $0x1e8] sm:$0xf]
  %v792 = vld [vmem:[%s3 + $0x1ec] sm:$0xf]
  %v793 = vld [vmem:[%s3 + $0x1f0] sm:$0xf]
  %v794 = vld [vmem:[%s3 + $0x1f4] sm:$0xf]
  %v795 = vld [vmem:[%s3 + $0x1f8] sm:$0xf]
  %v796 = vld [vmem:[%s3 + $0x1fc] sm:$0xf]
  %v797 = vld [vmem:[%s4 + $0x3] sm:$0x1]
  %v798 = vlaneseq
  %v799 = vshrl.u32 %v798, 7
  %v800 = vsub.s32 0, %v799
  %v801 = vrot.slane %v797, %v800
  %v930 = vunpack.c.l.b16 %v669
  %v931 = vunpack.c.l.b16 %v670
  %v932 = vunpack.c.l.b16 %v671
  %v933 = vunpack.c.l.b16 %v672
  %v934 = vunpack.c.l.b16 %v673
  %v935 = vunpack.c.l.b16 %v674
  %v936 = vunpack.c.l.b16 %v675
  %v937 = vunpack.c.l.b16 %v676
  %v938 = vunpack.c.l.b16 %v677
  %v939 = vunpack.c.l.b16 %v678
  %v940 = vunpack.c.l.b16 %v679
  %v941 = vunpack.c.l.b16 %v680
  %v942 = vunpack.c.l.b16 %v681
  %v943 = vunpack.c.l.b16 %v682
  %v944 = vunpack.c.l.b16 %v683
  %v945 = vunpack.c.l.b16 %v684
  %v946 = vunpack.c.l.b16 %v685
  %v947 = vunpack.c.l.b16 %v686
  %v948 = vunpack.c.l.b16 %v687
  %v949 = vunpack.c.l.b16 %v688
  %v950 = vunpack.c.l.b16 %v689
  %v951 = vunpack.c.l.b16 %v690
  %v952 = vunpack.c.l.b16 %v691
  %v953 = vunpack.c.l.b16 %v692
  %v954 = vunpack.c.l.b16 %v693
  %v955 = vunpack.c.l.b16 %v694
  %v956 = vunpack.c.l.b16 %v695
  %v957 = vunpack.c.l.b16 %v696
  %v958 = vunpack.c.l.b16 %v697
  %v959 = vunpack.c.l.b16 %v698
  %v960 = vunpack.c.l.b16 %v699
  %v961 = vunpack.c.l.b16 %v700
  %v962 = vunpack.c.l.b16 %v701
  %v963 = vunpack.c.l.b16 %v702
  %v964 = vunpack.c.l.b16 %v703
  %v965 = vunpack.c.l.b16 %v704
  %v966 = vunpack.c.l.b16 %v705
  %v967 = vunpack.c.l.b16 %v706
  %v968 = vunpack.c.l.b16 %v707
  %v969 = vunpack.c.l.b16 %v708
  %v970 = vunpack.c.l.b16 %v709
  %v971 = vunpack.c.l.b16 %v710
  %v972 = vunpack.c.l.b16 %v711
  %v973 = vunpack.c.l.b16 %v712
  %v974 = vunpack.c.l.b16 %v713
  %v975 = vunpack.c.l.b16 %v714
  %v976 = vunpack.c.l.b16 %v715
  %v977 = vunpack.c.l.b16 %v716
  %v978 = vunpack.c.l.b16 %v717
  %v979 = vunpack.c.l.b16 %v718
  %v980 = vunpack.c.l.b16 %v719
  %v981 = vunpack.c.l.b16 %v720
  %v982 = vunpack.c.l.b16 %v721
  %v983 = vunpack.c.l.b16 %v722
  %v984 = vunpack.c.l.b16 %v723
  %v985 = vunpack.c.l.b16 %v724
  %v986 = vunpack.c.l.b16 %v725
  %v987 = vunpack.c.l.b16 %v726
  %v988 = vunpack.c.l.b16 %v727
  %v989 = vunpack.c.l.b16 %v728
  %v990 = vunpack.c.l.b16 %v729
  %v991 = vunpack.c.l.b16 %v730
  %v992 = vunpack.c.l.b16 %v731
  %v993 = vunpack.c.l.b16 %v732
  %v994 = vunpack.c.l.b16 %v733
  %v995 = vunpack.c.l.b16 %v734
  %v996 = vunpack.c.l.b16 %v735
  %v997 = vunpack.c.l.b16 %v736
  %v998 = vunpack.c.l.b16 %v737
  %v999 = vunpack.c.l.b16 %v738
  %v1000 = vunpack.c.l.b16 %v739
  %v1001 = vunpack.c.l.b16 %v740
  %v1002 = vunpack.c.l.b16 %v741
  %v1003 = vunpack.c.l.b16 %v742
  %v1004 = vunpack.c.l.b16 %v743
  %v1005 = vunpack.c.l.b16 %v744
  %v1006 = vunpack.c.l.b16 %v745
  %v1007 = vunpack.c.l.b16 %v746
  %v1008 = vunpack.c.l.b16 %v747
  %v1009 = vunpack.c.l.b16 %v748
  %v1010 = vunpack.c.l.b16 %v749
  %v1011 = vunpack.c.l.b16 %v750
  %v1012 = vunpack.c.l.b16 %v751
  %v1013 = vunpack.c.l.b16 %v752
  %v1014 = vunpack.c.l.b16 %v753
  %v1015 = vunpack.c.l.b16 %v754
  %v1016 = vunpack.c.l.b16 %v755
  %v1017 = vunpack.c.l.b16 %v756
  %v1018 = vunpack.c.l.b16 %v757
  %v1019 = vunpack.c.l.b16 %v758
  %v1020 = vunpack.c.l.b16 %v759
  %v1021 = vunpack.c.l.b16 %v760
  %v1022 = vunpack.c.l.b16 %v761
  %v1023 = vunpack.c.l.b16 %v762
  %v1024 = vunpack.c.l.b16 %v763
  %v1025 = vunpack.c.l.b16 %v764
  %v1026 = vunpack.c.l.b16 %v765
  %v1027 = vunpack.c.l.b16 %v766
  %v1028 = vunpack.c.l.b16 %v767
  %v1029 = vunpack.c.l.b16 %v768
  %v1030 = vunpack.c.l.b16 %v769
  %v1031 = vunpack.c.l.b16 %v770
  %v1032 = vunpack.c.l.b16 %v771
  %v1033 = vunpack.c.l.b16 %v772
  %v1034 = vunpack.c.l.b16 %v773
  %v1035 = vunpack.c.l.b16 %v774
  %v1036 = vunpack.c.l.b16 %v775
  %v1037 = vunpack.c.l.b16 %v776
  %v1038 = vunpack.c.l.b16 %v777
  %v1039 = vunpack.c.l.b16 %v778
  %v1040 = vunpack.c.l.b16 %v779
  %v1041 = vunpack.c.l.b16 %v780
  %v1042 = vunpack.c.l.b16 %v781
  %v1043 = vunpack.c.l.b16 %v782
  %v1044 = vunpack.c.l.b16 %v783
  %v1045 = vunpack.c.l.b16 %v784
  %v1046 = vunpack.c.l.b16 %v785
  %v1047 = vunpack.c.l.b16 %v786
  %v1048 = vunpack.c.l.b16 %v787
  %v1049 = vunpack.c.l.b16 %v788
  %v1050 = vunpack.c.l.b16 %v789
  %v1051 = vunpack.c.l.b16 %v790
  %v1052 = vunpack.c.l.b16 %v791
  %v1053 = vunpack.c.l.b16 %v792
  %v1054 = vunpack.c.l.b16 %v793
  %v1055 = vunpack.c.l.b16 %v794
  %v1056 = vunpack.c.l.b16 %v795
  %v1057 = vunpack.c.l.b16 %v796
  %v1058 = vpack.c.b16 %v931, %v930
  %v1059 = vpack.c.b16 %v933, %v932
  %v1060 = vpack.c.b16 %v935, %v934
  %v1061 = vpack.c.b16 %v937, %v936
  %v1062 = vpack.c.b16 %v939, %v938
  %v1063 = vpack.c.b16 %v941, %v940
  %v1064 = vpack.c.b16 %v943, %v942
  %v1065 = vpack.c.b16 %v945, %v944
  %v1066 = vpack.c.b16 %v947, %v946
  %v1067 = vpack.c.b16 %v949, %v948
  %v1068 = vpack.c.b16 %v951, %v950
  %v1069 = vpack.c.b16 %v953, %v952
  %v1070 = vpack.c.b16 %v955, %v954
  %v1071 = vpack.c.b16 %v957, %v956
  %v1072 = vpack.c.b16 %v959, %v958
  %v1073 = vpack.c.b16 %v961, %v960
  %v1074 = vpack.c.b16 %v963, %v962
  %v1075 = vpack.c.b16 %v965, %v964
  %v1076 = vpack.c.b16 %v967, %v966
  %v1077 = vpack.c.b16 %v969, %v968
  %v1078 = vpack.c.b16 %v971, %v970
  %v1079 = vpack.c.b16 %v973, %v972
  %v1080 = vpack.c.b16 %v975, %v974
  %v1081 = vpack.c.b16 %v977, %v976
  %v1082 = vpack.c.b16 %v979, %v978
  %v1083 = vpack.c.b16 %v981, %v980
  %v1084 = vpack.c.b16 %v983, %v982
  %v1085 = vpack.c.b16 %v985, %v984
  %v1086 = vpack.c.b16 %v987, %v986
  %v1087 = vpack.c.b16 %v989, %v988
  %v1088 = vpack.c.b16 %v991, %v990
  %v1089 = vpack.c.b16 %v993, %v992
  %v1090 = vpack.c.b16 %v995, %v994
  %v1091 = vpack.c.b16 %v997, %v996
  %v1092 = vpack.c.b16 %v999, %v998
  %v1093 = vpack.c.b16 %v1001, %v1000
  %v1094 = vpack.c.b16 %v1003, %v1002
  %v1095 = vpack.c.b16 %v1005, %v1004
  %v1096 = vpack.c.b16 %v1007, %v1006
  %v1097 = vpack.c.b16 %v1009, %v1008
  %v1098 = vpack.c.b16 %v1011, %v1010
  %v1099 = vpack.c.b16 %v1013, %v1012
  %v1100 = vpack.c.b16 %v1015, %v1014
  %v1101 = vpack.c.b16 %v1017, %v1016
  %v1102 = vpack.c.b16 %v1019, %v1018
  %v1103 = vpack.c.b16 %v1021, %v1020
  %v1104 = vpack.c.b16 %v1023, %v1022
  %v1105 = vpack.c.b16 %v1025, %v1024
  %v1106 = vpack.c.b16 %v1027, %v1026
  %v1107 = vpack.c.b16 %v1029, %v1028
  %v1108 = vpack.c.b16 %v1031, %v1030
  %v1109 = vpack.c.b16 %v1033, %v1032
  %v1110 = vpack.c.b16 %v1035, %v1034
  %v1111 = vpack.c.b16 %v1037, %v1036
  %v1112 = vpack.c.b16 %v1039, %v1038
  %v1113 = vpack.c.b16 %v1041, %v1040
  %v1114 = vpack.c.b16 %v1043, %v1042
  %v1115 = vpack.c.b16 %v1045, %v1044
  %v1116 = vpack.c.b16 %v1047, %v1046
  %v1117 = vpack.c.b16 %v1049, %v1048
  %v1118 = vpack.c.b16 %v1051, %v1050
  %v1119 = vpack.c.b16 %v1053, %v1052
  %v1120 = vpack.c.b16 %v1055, %v1054
  %v1121 = vpack.c.b16 %v1057, %v1056
  %1186 = vmatprep.subr.bf16.mxu0 0
  %1187 = vmatpush1.bf16.msra.mxu0 %v1058
  %1188 = vmatprep.subr.bf16.mxu0 0
  %1189 = vmatpush1.bf16.msra.mxu0 %v1059
  %1190 = vmatprep.subr.bf16.mxu0 0
  %1191 = vmatpush1.bf16.msra.mxu0 %v1060
  %1192 = vmatprep.subr.bf16.mxu0 0
  %1193 = vmatpush1.bf16.msra.mxu0 %v1061
  %1194 = vmatprep.subr.bf16.mxu0 0
  %1195 = vmatpush1.bf16.msra.mxu0 %v1062
  %1196 = vmatprep.subr.bf16.mxu0 0
  %1197 = vmatpush1.bf16.msra.mxu0 %v1063
  %1198 = vmatprep.subr.bf16.mxu0 0
  %1199 = vmatpush1.bf16.msra.mxu0 %v1064
  %1200 = vmatprep.subr.bf16.mxu0 0
  %1201 = vmatpush1.bf16.msra.mxu0 %v1065
  %1202 = vmatprep.subr.bf16.mxu0 0
  %1203 = vmatpush1.bf16.msra.mxu0 %v1066
  %1204 = vmatprep.subr.bf16.mxu0 0
  %1205 = vmatpush1.bf16.msra.mxu0 %v1067
  %1206 = vmatprep.subr.bf16.mxu0 0
  %1207 = vmatpush1.bf16.msra.mxu0 %v1068
  %1208 = vmatprep.subr.bf16.mxu0 0
  %1209 = vmatpush1.bf16.msra.mxu0 %v1069
  %1210 = vmatprep.subr.bf16.mxu0 0
  %1211 = vmatpush1.bf16.msra.mxu0 %v1070
  %1212 = vmatprep.subr.bf16.mxu0 0
  %1213 = vmatpush1.bf16.msra.mxu0 %v1071
  %1214 = vmatprep.subr.bf16.mxu0 0
  %1215 = vmatpush1.bf16.msra.mxu0 %v1072
  %1216 = vmatprep.subr.bf16.mxu0 0
  %1217 = vmatpush1.bf16.msra.mxu0 %v1073
  %1218 = vmatprep.mubr.bf16.mxu0 %v662
  %1219 = vmatmul.mubr.bf16.gmra.mrb[0].mxu0 %v661
  %v1220 = vpop.f32.mrb[0].mxu0
  %v1221 = vadd.f32 %v801, %v1220
  %v1222 = vpop.f32.mrb[0].mxu0
  %v1223 = vpop.f32.mrb[0].mxu0
  %v1224 = vadd.f32 %v801, %v1223
  %v1225 = vpop.f32.mrb[0].mxu0
  %1226 = vdwg.mxu0
  %1227 = vmatprep.subr.bf16.mxu0 0
  %1228 = vmatpush1.bf16.msra.mxu0 %v1074
  %1229 = vmatprep.subr.bf16.mxu0 0
  %1230 = vmatpush1.bf16.msra.mxu0 %v1075
  %1231 = vmatprep.subr.bf16.mxu0 0
  %1232 = vmatpush1.bf16.msra.mxu0 %v1076
  %1233 = vmatprep.subr.bf16.mxu0 0
  %1234 = vmatpush1.bf16.msra.mxu0 %v1077
  %1235 = vmatprep.subr.bf16.mxu0 0
  %1236 = vmatpush1.bf16.msra.mxu0 %v1078
  %1237 = vmatprep.subr.bf16.mxu0 0
  %1238 = vmatpush1.bf16.msra.mxu0 %v1079
  %1239 = vmatprep.subr.bf16.mxu0 0
  %1240 = vmatpush1.bf16.msra.mxu0 %v1080
  %1241 = vmatprep.subr.bf16.mxu0 0
  %1242 = vmatpush1.bf16.msra.mxu0 %v1081
  %1243 = vmatprep.subr.bf16.mxu0 0
  %1244 = vmatpush1.bf16.msra.mxu0 %v1082
  %1245 = vmatprep.subr.bf16.mxu0 0
  %1246 = vmatpush1.bf16.msra.mxu0 %v1083
  %1247 = vmatprep.subr.bf16.mxu0 0
  %1248 = vmatpush1.bf16.msra.mxu0 %v1084
  %1249 = vmatprep.subr.bf16.mxu0 0
  %1250 = vmatpush1.bf16.msra.mxu0 %v1085
  %1251 = vmatprep.subr.bf16.mxu0 0
  %1252 = vmatpush1.bf16.msra.mxu0 %v1086
  %1253 = vmatprep.subr.bf16.mxu0 0
  %1254 = vmatpush1.bf16.msra.mxu0 %v1087
  %1255 = vmatprep.subr.bf16.mxu0 0
  %1256 = vmatpush1.bf16.msra.mxu0 %v1088
  %1257 = vmatprep.subr.bf16.mxu0 0
  %1258 = vmatpush1.bf16.msra.mxu0 %v1089
  %1259 = vmatprep.mubr.bf16.mxu0 %v664
  %1260 = vmatmul.mubr.bf16.gmra.mrb[0].mxu0 %v663
  %v1261 = vpop.f32.mrb[0].mxu0
  %v1262 = vadd.f32 %v1221, %v1261
  %v1263 = vpop.f32.mrb[0].mxu0
  %v1264 = vpop.f32.mrb[0].mxu0
  %v1265 = vadd.f32 %v1224, %v1264
  %v1266 = vpop.f32.mrb[0].mxu0
  %1267 = vdwg.mxu0
  %1268 = vmatprep.subr.bf16.mxu0 0
  %1269 = vmatpush1.bf16.msra.mxu0 %v1090
  %1270 = vmatprep.subr.bf16.mxu0 0
  %1271 = vmatpush1.bf16.msra.mxu0 %v1091
  %1272 = vmatprep.subr.bf16.mxu0 0
  %1273 = vmatpush1.bf16.msra.mxu0 %v1092
  %1274 = vmatprep.subr.bf16.mxu0 0
  %1275 = vmatpush1.bf16.msra.mxu0 %v1093
  %1276 = vmatprep.subr.bf16.mxu0 0
  %1277 = vmatpush1.bf16.msra.mxu0 %v1094
  %1278 = vmatprep.subr.bf16.mxu0 0
  %1279 = vmatpush1.bf16.msra.mxu0 %v1095
  %1280 = vmatprep.subr.bf16.mxu0 0
  %1281 = vmatpush1.bf16.msra.mxu0 %v1096
  %1282 = vmatprep.subr.bf16.mxu0 0
  %1283 = vmatpush1.bf16.msra.mxu0 %v1097
  %1284 = vmatprep.subr.bf16.mxu0 0
  %1285 = vmatpush1.bf16.msra.mxu0 %v1098
  %1286 = vmatprep.subr.bf16.mxu0 0
  %1287 = vmatpush1.bf16.msra.mxu0 %v1099
  %1288 = vmatprep.subr.bf16.mxu0 0
  %1289 = vmatpush1.bf16.msra.mxu0 %v1100
  %1290 = vmatprep.subr.bf16.mxu0 0
  %1291 = vmatpush1.bf16.msra.mxu0 %v1101
  %1292 = vmatprep.subr.bf16.mxu0 0
  %1293 = vmatpush1.bf16.msra.mxu0 %v1102
  %1294 = vmatprep.subr.bf16.mxu0 0
  %1295 = vmatpush1.bf16.msra.mxu0 %v1103
  %1296 = vmatprep.subr.bf16.mxu0 0
  %1297 = vmatpush1.bf16.msra.mxu0 %v1104
  %1298 = vmatprep.subr.bf16.mxu0 0
  %1299 = vmatpush1.bf16.msra.mxu0 %v1105
  %1300 = vmatprep.mubr.bf16.mxu0 %v666
  %1301 = vmatmul.mubr.bf16.gmra.mrb[0].mxu0 %v665
  %v1302 = vpop.f32.mrb[0].mxu0
  %v1303 = vadd.f32 %v1262, %v1302
  %v1304 = vpop.f32.mrb[0].mxu0
  %v1305 = vpop.f32.mrb[0].mxu0
  %v1306 = vadd.f32 %v1265, %v1305
  %v1307 = vpop.f32.mrb[0].mxu0
  %1308 = vdwg.mxu0
  %1309 = vmatprep.subr.bf16.mxu0 0
  %1310 = vmatpush1.bf16.msra.mxu0 %v1106
  %1311 = vmatprep.subr.bf16.mxu0 0
  %1312 = vmatpush1.bf16.msra.mxu0 %v1107
  %1313 = vmatprep.subr.bf16.mxu0 0
  %1314 = vmatpush1.bf16.msra.mxu0 %v1108
  %1315 = vmatprep.subr.bf16.mxu0 0
  %1316 = vmatpush1.bf16.msra.mxu0 %v1109
  %1317 = vmatprep.subr.bf16.mxu0 0
  %1318 = vmatpush1.bf16.msra.mxu0 %v1110
  %1319 = vmatprep.subr.bf16.mxu0 0
  %1320 = vmatpush1.bf16.msra.mxu0 %v1111
  %1321 = vmatprep.subr.bf16.mxu0 0
  %1322 = vmatpush1.bf16.msra.mxu0 %v1112
  %1323 = vmatprep.subr.bf16.mxu0 0
  %1324 = vmatpush1.bf16.msra.mxu0 %v1113
  %1325 = vmatprep.subr.bf16.mxu0 0
  %1326 = vmatpush1.bf16.msra.mxu0 %v1114
  %1327 = vmatprep.subr.bf16.mxu0 0
  %1328 = vmatpush1.bf16.msra.mxu0 %v1115
  %1329 = vmatprep.subr.bf16.mxu0 0
  %1330 = vmatpush1.bf16.msra.mxu0 %v1116
  %1331 = vmatprep.subr.bf16.mxu0 0
  %1332 = vmatpush1.bf16.msra.mxu0 %v1117
  %1333 = vmatprep.subr.bf16.mxu0 0
  %1334 = vmatpush1.bf16.msra.mxu0 %v1118
  %1335 = vmatprep.subr.bf16.mxu0 0
  %1336 = vmatpush1.bf16.msra.mxu0 %v1119
  %1337 = vmatprep.subr.bf16.mxu0 0
  %1338 = vmatpush1.bf16.msra.mxu0 %v1120
  %1339 = vmatprep.subr.bf16.mxu0 0
  %1340 = vmatpush1.bf16.msra.mxu0 %v1121
  %1341 = vmatprep.mubr.bf16.mxu0 %v668
  %1342 = vmatmul.mubr.bf16.gmra.mrb[0].mxu0 %v667
  %v1343 = vpop.f32.mrb[0].mxu0
  %v1344 = vadd.f32 %v1303, %v1343
  %v1345 = vpop.f32.mrb[0].mxu0
  %v1346 = vpop.f32.mrb[0].mxu0
  %v1347 = vadd.f32 %v1306, %v1346
  %v1348 = vpop.f32.mrb[0].mxu0
  %1349 = vdwg.mxu0
  %vm1350 = vcmask 64512
  %v1351 = vsel %vm1350, %v1344, inf
  %1352 = vmin.xlane.f32.xlu0 %v1351
  %v1353 = vpop.xlane.xlu0 %1352
  %v1354 = vsel %vm1350, %v1347, inf
  %1355 = vmin.xlane.f32.xlu0 %v1354
  %v1356 = vpop.xlane.xlu0 %1355
  %v1357 = vld [vmem:[%s4] sm:$0x1]
  %v1358 = vld [vmem:[%s4 + $0x1] sm:$0x1]
  %v1359 = vld [vmem:[%s4 + $0x2] sm:$0x1]
  %v1360 = vlaneseq
  %v1361 = vshrl.u32 %v1360, 7
  %v1362 = vsub.s32 0, %v1361
  %v1363 = vrot.slane %v1358, %v1362
  %v1364 = vmul.f32 %v23, %v1363
  %v1365 = vmul.f32 %v24, %v1363
  %v1366 = vmul.f32 %v1364, 1.442695
  %v1367 = vpow.pop %v1366
  %v1368 = vmul.f32 %v1365, 1.442695
  %v1369 = vpow.pop %v1368
  %v1370 = vlaneseq
  %v1371 = vshrl.u32 %v1370, 7
  %v1372 = vsub.s32 0, %v1371
  %v1373 = vrot.slane %v1357, %v1372
  %v1374 = vmul.f32 %v1373, %v1367
  %v1375 = vmul.f32 %v1373, %v1369
  %v1376 = vlaneseq
  %v1377 = vshrl.u32 %v1376, 7
  %v1378 = vsub.s32 0, %v1377
  %v1379 = vrot.slane %v1359, %v1378
  %v1380 = vmul.f32 %v1379, %v23
  %v1381 = vmul.f32 %v1379, %v24
  %v1382 = vmul.f32 %v1380, %v23
  %v1383 = vmul.f32 %v1381, %v24
  %v1384 = vadd.f32 %v1374, %v1382
  %v1385 = vadd.f32 %v1375, %v1383
  %1386 = vadd.xlane.f32.xlu0 %v1384
  %v1387 = vpop.xlane.xlu0 %1386
  %1388 = vadd.xlane.f32.xlu0 %v1385
  %v1389 = vpop.xlane.xlu0 %1388
  %v1390 = vadd.f32 %v1353, %v1387
  %v1391 = vadd.f32 %v1356, %v1389
  %v1392 = vmul.f32 %v23, %v1390
  %v1393 = vmul.f32 %v24, %v1391
  %1396 = vrot.lane.b32.xlu0 %v1392, 1
  %v1397 = vpop.permute.xlu0 %1396
  %1398 = vrot.lane.b32.xlu0 %v1393, 1
  %v1399 = vpop.permute.xlu0 %1398
  %vm1402 = vcmask 7168
  %v1403 = vsel %vm1402, %v1397, 0.0
  %v1404 = vsel %vm1402, %v1399, 0.0
  %v1405 = vadd.f32 %v1403, %v1404
  %1406 = vadd.xlane.f32.xlu0 %v1405
  %v1407 = vpop.xlane.xlu0 %1406
  %v1408 = vrot.slane %v1407, 4
  %v1409 = vadd.f32 %v1407, %v1408
  %v1410 = vrot.slane %v1409, 2
  %v1411 = vadd.f32 %v1409, %v1410
  %v1412 = vrot.slane %v1411, 1
  %v1413 = vadd.f32 %v1411, %v1412
  %s1414 = vtos %v1413
  %v1415 = vstv %s1414
  %v1416 = vadd.f32 %v1415, 0.0
  %1417 = vst [vmem:[%s5] sm:$0xff] %v1416
  // Predicated region
  $region22: #{prior_loss_pallas.1} parent=0 // pred_check
    _
  $region23: #{prior_loss_pallas.1} parent=0 // pred_check_branch
    %1419 = sbr.rel (0) target = $region25
  $region24: #{prior_loss_pallas.1} parent=0 // pred_region
    _
  $region25: #{prior_loss_pallas.1} parent=0 // pred_fallthru
    _
  // Predicated region
  $region26: #{prior_loss_pallas.1} parent=0 // pred_check
    _
  $region27: #{prior_loss_pallas.1} parent=0 // pred_check_branch
    %1421 = sbr.rel (0) target = $region29
  $region28: #{prior_loss_pallas.1} parent=0 // pred_region
    _
  $region29: #{prior_loss_pallas.1} parent=0 // pred_fallthru
    _

</llo_original>
